<compile_context>
chip_gen: v7x
topology: tpu7x:2x2x1
jax: 0.10.0
libtpu: 0.0.40
codegen_flags: <defaults>
</compile_context>

<pallas_src>
import numpy as np
import jax
import jax.numpy as jnp
from jax.experimental import pallas as pl
from jax.experimental.pallas import tpu as pltpu


# ----------------------------- Pallas kernel -------------------------------

def melstft_kernel(frames_ref, w_ref, melT_ref, out_ref):
    nbp = w_ref.shape[1] // 2                 # static, multiple of 128
    f = frames_ref[...]                                            # (T, n_fft) bf16
    # single fused DFT matmul: columns [0:NBp) = re, [NBp:2*NBp) = im
    y = jnp.dot(f, w_ref[...], preferred_element_type=jnp.float32)  # (T, 2*NBp) f32
    re = y[:, :nbp]
    im = y[:, nbp:]
    power = re * re + im * im                                      # (T, NBp) f32
    mel = jnp.dot(power.astype(jnp.bfloat16), melT_ref[...],
                  preferred_element_type=jnp.float32)              # (T, n_mels_pad)
    # (log(mel+1e-5)+4.5)/5 with the constant divide folded
    out_ref[...] = jnp.log(mel + 1e-5) * 0.2 + 0.9


def melstft_pallas(frames_flat, w_mat, melT, n_mels, tile_rows=128):
    R, n_fft = frames_flat.shape
    two_nbp = w_mat.shape[1]
    nbp, n_mels_pad = melT.shape
    Rp = pl.cdiv(R, tile_rows) * tile_rows
    if Rp != R:
        frames_flat = jnp.pad(frames_flat, ((0, Rp - R), (0, 0)))
    out = pl.pallas_call(
        melstft_kernel,
        out_shape=jax.ShapeDtypeStruct((Rp, n_mels_pad), jnp.float32),
        grid=(Rp // tile_rows,),
        in_specs=[
            pl.BlockSpec((tile_rows, n_fft), lambda i: (i, 0)),
            pl.BlockSpec((n_fft, two_nbp), lambda i: (0, 0)),
            pl.BlockSpec((nbp, n_mels_pad), lambda i: (0, 0)),
        ],
        out_specs=pl.BlockSpec((tile_rows, n_mels_pad), lambda i: (i, 0)),
        compiler_params=pltpu.CompilerParams(
            dimension_semantics=("parallel",),
            vmem_limit_bytes=32 * 1024 * 1024),
    )(frames_flat, w_mat, melT)
    return out[:R, :n_mels]


# --------------------- kaldi mel filterbank (numpy glue) -------------------

def _mel_scale(freq):
    return 1127.0 * np.log(1.0 + freq / 700.0)


def kaldi_get_mel_banks(num_bins, window_length_padded, sample_freq,
                        low_freq, high_freq):
    # Equivalent to torchaudio.compliance.kaldi.get_mel_banks with
    # vtln_warp_factor=1.0 (no warping).
    num_fft_bins = window_length_padded // 2
    nyquist = 0.5 * sample_freq
    if high_freq <= 0.0:
        high_freq += nyquist
    assert 0.0 <= low_freq < nyquist and 0.0 < high_freq <= nyquist
    fft_bin_width = sample_freq / window_length_padded
    mel_low = _mel_scale(low_freq)
    mel_high = _mel_scale(high_freq)
    mel_freq_delta = (mel_high - mel_low) / (num_bins + 1)

    bin_idx = np.arange(num_bins, dtype=np.float64).reshape(-1, 1)
    left_mel = mel_low + bin_idx * mel_freq_delta
    center_mel = left_mel + mel_freq_delta
    right_mel = center_mel + mel_freq_delta

    mel = _mel_scale(fft_bin_width * np.arange(num_fft_bins, dtype=np.float64))
    mel = mel.reshape(1, -1)
    up_slope = (mel - left_mel) / (center_mel - left_mel)
    down_slope = (right_mel - mel) / (right_mel - center_mel)
    bins = np.maximum(0.0, np.minimum(up_slope, down_slope))
    return bins.astype(np.float32)


# ----------------------------- full forward --------------------------------

def mel_stft_forward(x, *, n_mels, sr, win_length, hopsize, n_fft,
                     fmin, fmax, fmin_aug_range, fmax_aug_range, rng):
    x = x.astype(jnp.float32)
    # preemphasis: conv1d(x, [[-0.97, 1]]) (valid) -> out[t] = x[t+1] - 0.97*x[t]
    xp = x[:, 1:] - 0.97 * x[:, :-1]

    # torch.stft(center=True): reflect-pad n_fft//2 on both sides
    pad = n_fft // 2
    xpad = jnp.pad(xp, ((0, 0), (pad, pad)), mode="reflect")
    B, Lp = xpad.shape
    n_frames = 1 + (Lp - n_fft) // hopsize
    # TODO(synk): move framing into the kernel (strided DMA of contiguous
    # per-tile signal chunks) to cut HBM input traffic by ~n_fft/hopsize;
    # kept here as a wrapper-side gather with a static index map.
    idx = np.arange(n_frames)[:, None] * hopsize + np.arange(n_fft)[None, :]
    frames = xpad[:, idx]                                  # (B, n_frames, n_fft)
    frames_flat = frames.reshape(B * n_frames, n_fft)

    # hann window, symmetric (torch.hann_window(win_length, periodic=False)),
    # zero-padded centered to n_fft as torch.stft does.
    win = 0.5 - 0.5 * np.cos(2.0 * np.pi * np.arange(win_length) / (win_length - 1))
    left = (n_fft - win_length) // 2
    win_p = np.zeros(n_fft, np.float32)
    win_p[left:left + win_length] = win

    # fused window-folded DFT matrix [cos | -sin]; freq bins padded to mult of 128
    n_bins = n_fft // 2 + 1
    NBp = ((n_bins + 127) // 128) * 128
    n = np.arange(n_fft, dtype=np.float64)[:, None]
    k = np.arange(n_bins, dtype=np.float64)[None, :]
    ang = 2.0 * np.pi * n * k / n_fft
    w_mat = np.zeros((n_fft, 2 * NBp), np.float32)
    w_mat[:, :n_bins] = (win_p[:, None] * np.cos(ang)).astype(np.float32)
    w_mat[:, NBp:NBp + n_bins] = (-win_p[:, None] * np.sin(ang)).astype(np.float32)

    # fmin/fmax augmentation (torch.randint replaced by deterministic host rng)
    fmin_a = fmin + int(rng.integers(fmin_aug_range))
    fmax_a = fmax + fmax_aug_range // 2 - int(rng.integers(fmax_aug_range))
    mel = kaldi_get_mel_banks(n_mels, n_fft, sr, float(fmin_a), float(fmax_a))
    mel = np.pad(mel, ((0, 0), (0, 1)))                    # F.pad(..., (0,1))
    n_mels_pad = ((n_mels + 127) // 128) * 128             # lane-dense output
    melT = np.zeros((NBp, n_mels_pad), np.float32)
    melT[:n_bins, :n_mels] = mel.T

    # bf16 MXU operands (accumulation / epilogue stay f32 inside the kernel)
    frames_bf = frames_flat.astype(jnp.bfloat16)
    w_bf = jnp.asarray(w_mat, dtype=jnp.bfloat16)
    melT_bf = jnp.asarray(melT, dtype=jnp.bfloat16)

    out_flat = melstft_pallas(frames_bf, w_bf, melT_bf, n_mels)
    # -> PyTorch layout (B, n_mels, n_frames)
    return out_flat.reshape(B, n_frames, n_mels).transpose(0, 2, 1), \
        (frames_bf, w_bf, melT_bf)


# --------------------------------- main -------------------------------------

if __name__ == "__main__":
    # Small shapes consistent with the module's 1-D audio forward; L chosen so
    # R = B * n_frames = 256 -> grid of 2 parallel steps at tile_rows=128.
    B, L = 2, 4096
    n_mels, sr = 32, 4000
    win_length, hopsize, n_fft = 96, 32, 128
    fmin, fmin_aug_range, fmax_aug_range = 0.0, 10, 100
    fmax = sr // 2 - fmax_aug_range // 2   # matches the fmax=None branch

    key = jax.random.PRNGKey(0)
    x = jax.random.normal(key, (B, L), dtype=jnp.float32)

    rng = np.random.default_rng(0)
    out, (frames_bf, w_bf, melT_bf) = mel_stft_forward(
        x, n_mels=n_mels, sr=sr, win_length=win_length, hopsize=hopsize,
        n_fft=n_fft, fmin=fmin, fmax=fmax,
        fmin_aug_range=fmin_aug_range, fmax_aug_range=fmax_aug_range, rng=rng)
    out = jax.block_until_ready(out)

    # sanity check: same math in float64 using the bf16-rounded operands
    f64 = np.asarray(frames_bf.astype(jnp.float32), dtype=np.float64)
    w64 = np.asarray(w_bf.astype(jnp.float32), dtype=np.float64)
    m64 = np.asarray(melT_bf.astype(jnp.float32), dtype=np.float64)
    NBp = w64.shape[1] // 2
    y = f64 @ w64
    power = y[:, :NBp] ** 2 + y[:, NBp:] ** 2
    ref = np.log(power @ m64 + 1e-5) * 0.2 + 0.9
    n_frames = out.shape[-1]
    ref = ref[:, :n_mels].reshape(B, n_frames, n_mels).transpose(0, 2, 1)

    assert out.shape == (B, n_mels, 1 + (L - 1) // hopsize)
    assert np.allclose(np.asarray(out), ref, rtol=5e-2, atol=5e-2)

    print("KERNEL_OK")
</pallas_src>

<mosaic_0001>
module attributes {stable_mosaic.version = 11 : i64} {
  func.func @melstft_kernel(%arg0: i32, %arg1: memref<128x128xbf16, #tpu.memory_space<vmem>>, %arg2: memref<128x256xbf16, #tpu.memory_space<vmem>>, %arg3: memref<128x128xbf16, #tpu.memory_space<vmem>>, %arg4: memref<128x128xf32, #tpu.memory_space<vmem>>) attributes {dimension_semantics = [#tpu.dimension_semantics<parallel>], iteration_bounds = array<i64: 2>, scalar_prefetch = 0 : i64, scratch_operands = 0 : i64, tpu.core_type = #tpu.core_type<tc>, window_params = [{transform_indices = @transform_0, window_bounds = array<i64: 128, 128>}, {pipeline_mode = #tpu.pipeline_mode<synchronous>, transform_indices = @transform_1, window_bounds = array<i64: 128, 256>}, {pipeline_mode = #tpu.pipeline_mode<synchronous>, transform_indices = @transform_2, window_bounds = array<i64: 128, 128>}, {transform_indices = @transform_3, window_bounds = array<i64: 128, 128>}]} {
    %c0 = arith.constant 0 : index
    %c0_0 = arith.constant 0 : index
    %0 = vector.load %arg1[%c0, %c0_0] : memref<128x128xbf16, #tpu.memory_space<vmem>>, vector<128x128xbf16>
    %c0_1 = arith.constant 0 : index
    %c0_2 = arith.constant 0 : index
    %1 = vector.load %arg2[%c0_1, %c0_2] : memref<128x256xbf16, #tpu.memory_space<vmem>>, vector<128x256xbf16>
    %cst = arith.constant dense<0.000000e+00> : vector<128x256xf32>
    %2 = tpu.matmul %0, %1, %cst {dimension_numbers = #tpu.dot_dimension_numbers<[1], [0], [0], [1], [0, 0, 1, 1], [], []>} : vector<128x128xbf16>, vector<128x256xbf16>, vector<128x256xf32> -> vector<128x256xf32>
    %3 = vector.extract_strided_slice %2 {offsets = [0, 0], sizes = [128, 128], strides = [1, 1]} : vector<128x256xf32> to vector<128x128xf32>
    %4 = vector.extract_strided_slice %2 {offsets = [0, 128], sizes = [128, 128], strides = [1, 1]} : vector<128x256xf32> to vector<128x128xf32>
    %5 = arith.mulf %3, %3 : vector<128x128xf32>
    %6 = arith.mulf %4, %4 : vector<128x128xf32>
    %7 = arith.addf %5, %6 : vector<128x128xf32>
    %8 = arith.truncf %7 : vector<128x128xf32> to vector<128x128xbf16>
    %c0_3 = arith.constant 0 : index
    %c0_4 = arith.constant 0 : index
    %9 = vector.load %arg3[%c0_3, %c0_4] : memref<128x128xbf16, #tpu.memory_space<vmem>>, vector<128x128xbf16>
    %cst_5 = arith.constant dense<0.000000e+00> : vector<128x128xf32>
    %10 = tpu.matmul %8, %9, %cst_5 {dimension_numbers = #tpu.dot_dimension_numbers<[1], [0], [0], [1], [0, 0, 1, 1], [], []>} : vector<128x128xbf16>, vector<128x128xbf16>, vector<128x128xf32> -> vector<128x128xf32>
    %cst_6 = arith.constant 9.99999974E-6 : f32
    %11 = vector.broadcast %cst_6 : f32 to vector<128x128xf32>
    %12 = arith.addf %10, %11 : vector<128x128xf32>
    %13 = math.log %12 : vector<128x128xf32>
    %cst_7 = arith.constant 2.000000e-01 : f32
    %14 = vector.broadcast %cst_7 : f32 to vector<128x128xf32>
    %15 = arith.mulf %13, %14 : vector<128x128xf32>
    %cst_8 = arith.constant 0.899999976 : f32
    %16 = vector.broadcast %cst_8 : f32 to vector<128x128xf32>
    %17 = arith.addf %15, %16 : vector<128x128xf32>
    %c0_9 = arith.constant 0 : index
    %c0_10 = arith.constant 0 : index
    %18 = vector.load %arg4[%c0_9, %c0_10] : memref<128x128xf32, #tpu.memory_space<vmem>>, vector<128x128xf32>
    tpu.vector_store %arg4[%c0_9, %c0_10], %17 {strides = array<i32>} : memref<128x128xf32, #tpu.memory_space<vmem>>, vector<128x128xf32>,
    return
  }
  func.func @transform_0(%arg0: i32) -> (i32, i32) {
    %c0_i32 = arith.constant 0 : i32
    %c0_i32_0 = arith.constant 0 : i32
    return %arg0, %c0_i32 : i32, i32
  }
  func.func @transform_1(%arg0: i32) -> (i32, i32) {
    %c0_i32 = arith.constant 0 : i32
    %c0_i32_0 = arith.constant 0 : i32
    %c0_i32_1 = arith.constant 0 : i32
    return %c0_i32, %c0_i32_0 : i32, i32
  }
  func.func @transform_2(%arg0: i32) -> (i32, i32) {
    %c0_i32 = arith.constant 0 : i32
    %c0_i32_0 = arith.constant 0 : i32
    %c0_i32_1 = arith.constant 0 : i32
    return %c0_i32, %c0_i32_0 : i32, i32
  }
  func.func @transform_3(%arg0: i32) -> (i32, i32) {
    %c0_i32 = arith.constant 0 : i32
    %c0_i32_0 = arith.constant 0 : i32
    return %arg0, %c0_i32 : i32, i32
  }
}

</mosaic_0001>

<llo_original>
// kernel: tpu_custom_call.1
$region0: #{tpu_custom_call.1}
  #allocation0 [shape = 'u32[]', space=smem, size = 0x4, offset = 0x4, fixed_abs, tag = 'smem constant byte address 0x4 - core index']
  #allocation1 [shape = 'u32[144,128]{1,0:T(1,128)}', space=vmem, size = 0x12000, scoped, tag = 'internal scratch']
  %s0 = inlined_call_operand.hbm [shape: bf16[256,128], index: 0, kind: input, shape index: {}]
  %s1 = inlined_call_operand.hbm [shape: bf16[128,256], index: 1, kind: input, shape index: {}]
  %s2 = inlined_call_operand.hbm [shape: bf16[128,128], index: 2, kind: input, shape index: {}]
  %s3 = inlined_call_operand.hbm [shape: f32[256,128], index: 3, kind: output, shape index: {}]
  %s4 = sld [smem:[#allocation0]]
  $region57: #{tpu_custom_call.1} parent=0
    _
  %s6 = ssub.s32 1, %s4
  %s7 = scalar_select 0, %s6, %s4
  $region1: #{tpu_custom_call.1} parent=0
    #allocation2 [shape = 'u8[65536]{0}', space=vmem, size = 0x10000, scoped, tag = 'input window, operand 0']
    #allocation3 [shape = 's32[2]{0}', space=sflag, size = 0x8, scoped, tag = 'scoped memory for tpu_custom_call.1']
    #allocation4 [shape = 's32[2]{0}', space=sflag, size = 0x8, scoped, tag = 'scoped memory for tpu_custom_call.1']
    #allocation5 [shape = 'u8[65536]{0}', space=vmem, size = 0x10000, scoped, tag = 'input window, operand 1, single buffered']
    #allocation6 [shape = 's32[1]{0}', space=sflag, size = 0x4, scoped, tag = 'scoped memory for tpu_custom_call.1']
    #allocation7 [shape = 'u8[32768]{0}', space=vmem, size = 0x8000, scoped, tag = 'input window, operand 2, single buffered']
    #allocation8 [shape = 'u8[131072]{0}', space=vmem, size = 0x20000, scoped, tag = 'output window, operand 0']
    %8 = vsyncpa [#allocation3], 0
    %s9 = scalar_lea.sflag [#allocation3], 1
    %10 = vsyncpa %s9, 0
    %11 = vsyncpa [#allocation6], 0
    %12 = vsyncpa [#allocation4], 0
    %s13 = scalar_lea.sflag [#allocation4], 1
    %14 = vsyncpa %s13, 0
    loop: start=0, step=1, limit=4
    $region2: #{tpu_custom_call.1} parent=1 // loop_pre_header
      _
    $region3: #{tpu_custom_call.1} parent=1 // loop_header
      %s16 = sphi 0, %s20
      %p17 = scmp.ge.s32.totalorder %s16, 4
      %s26 = sphi 0, %s28
      %s29 = sphi 0, %s26
      %s30 = sphi 0, %s29
      %s46 = sphi 0, %s30
      %s50 = sphi 0, %s50
      %s52 = sphi 0, %s50
      %s53 = sphi 0, %s52
      %s67 = sphi 0, %s53
      %s71 = sphi 0, %s71
      %s73 = sphi 0, %s71
      %s74 = sphi 0, %s73
      %s88 = sphi 0, %s74
      %s94 = sphi 0, %s96
      %s97 = sphi 0, %s94
      %s98 = sphi 0, %s97
      %s114 = sphi 0, %s98
    $region4: #{tpu_custom_call.1} parent=1 // loop_header_branch
      %19 = sbr.rel (%p17) target = $region8
    $region5: #{tpu_custom_call.1} parent=1 // loop_body
      %s21 = ssub.s32 %s16, 1
      %s22 = ssub.s32 %s16, 2
      %s23 = sadd.s32 %s16, 1
      %s24 = ssub.s32 %s16, %s23
      %p25 = scmp.eq.s32.totalorder %s24, 0
      %s27 = sadd.s32 %s26, 1
      %s28 = scalar_select %p25, %s26, %s27
      %p31 = pneg %p25
      %p32 = scmp.eq.s32.totalorder %s16, 1
      %p33 = por %p31, %p32
      %p34 = scmp.ne.s32.totalorder %s26, %s29
      %p35 = scmp.eq.s32.totalorder %s16, 0
      %p36 = por %p34, %p35
      %p37 = scmp.ne.s32.totalorder %s26, %s29
      %p38 = scmp.eq.s32.totalorder %s21, 1
      %p39 = por %p37, %p38
      %p40 = scmp.ne.s32.totalorder %s29, %s30
      %p41 = scmp.eq.s32.totalorder %s21, 0
      %p42 = por %p40, %p41
      %p43 = scmp.ne.s32.totalorder %s29, %s30
      %p44 = scmp.eq.s32.totalorder %s22, 1
      %p45 = por %p43, %p44
      %p47 = scmp.ne.s32.totalorder %s30, %s46
      %p48 = scmp.eq.s32.totalorder %s22, 0
      %p49 = por %p47, %p48
      %s51 = sadd.s32 %s50, 1
      %p54 = scmp.eq.s32.totalorder %s16, 1
      %p55 = scmp.ne.s32.totalorder %s50, %s52
      %p56 = scmp.eq.s32.totalorder %s16, 0
      %p57 = por %p55, %p56
      %p58 = scmp.ne.s32.totalorder %s50, %s52
      %p59 = scmp.eq.s32.totalorder %s21, 1
      %p60 = por %p58, %p59
      %p61 = scmp.ne.s32.totalorder %s52, %s53
      %p62 = scmp.eq.s32.totalorder %s21, 0
      %p63 = por %p61, %p62
      %p64 = scmp.ne.s32.totalorder %s52, %s53
      %p65 = scmp.eq.s32.totalorder %s22, 1
      %p66 = por %p64, %p65
      %p68 = scmp.ne.s32.totalorder %s53, %s67
      %p69 = scmp.eq.s32.totalorder %s22, 0
      %p70 = por %p68, %p69
      %s72 = sadd.s32 %s71, 1
      %p75 = scmp.eq.s32.totalorder %s16, 1
      %p76 = scmp.ne.s32.totalorder %s71, %s73
      %p77 = scmp.eq.s32.totalorder %s16, 0
      %p78 = por %p76, %p77
      %p79 = scmp.ne.s32.totalorder %s71, %s73
      %p80 = scmp.eq.s32.totalorder %s21, 1
      %p81 = por %p79, %p80
      %p82 = scmp.ne.s32.totalorder %s73, %s74
      %p83 = scmp.eq.s32.totalorder %s21, 0
      %p84 = por %p82, %p83
      %p85 = scmp.ne.s32.totalorder %s73, %s74
      %p86 = scmp.eq.s32.totalorder %s22, 1
      %p87 = por %p85, %p86
      %p89 = scmp.ne.s32.totalorder %s74, %s88
      %p90 = scmp.eq.s32.totalorder %s22, 0
      %p91 = por %p89, %p90
      %s92 = ssub.s32 %s16, %s23
      %p93 = scmp.eq.s32.totalorder %s92, 0
      %s95 = sadd.s32 %s94, 1
      %s96 = scalar_select %p93, %s94, %s95
      %p99 = pneg %p93
      %p100 = scmp.eq.s32.totalorder %s16, 1
      %p101 = por %p99, %p100
      %p102 = scmp.ne.s32.totalorder %s94, %s97
      %p103 = scmp.eq.s32.totalorder %s16, 0
      %p104 = por %p102, %p103
      %p105 = scmp.ne.s32.totalorder %s94, %s97
      %p106 = scmp.eq.s32.totalorder %s21, 1
      %p107 = por %p105, %p106
      %p108 = scmp.ne.s32.totalorder %s97, %s98
      %p109 = scmp.eq.s32.totalorder %s21, 0
      %p110 = por %p108, %p109
      %p111 = scmp.ne.s32.totalorder %s97, %s98
      %p112 = scmp.eq.s32.totalorder %s22, 1
      %p113 = por %p111, %p112
      %p115 = scmp.ne.s32.totalorder %s98, %s114
      %p116 = scmp.eq.s32.totalorder %s22, 0
      %p117 = por %p115, %p116
      %p118 = scmp.le.s32.totalorder 1, %s16
      %p119 = scmp.lt.s32.totalorder %s16, 3
      %p120 = pnand %p118, %p119
      %p121 = pneg %p120
      // Predicated region
      $region9: #{tpu_custom_call.1} parent=5 // pred_check
        _
      $region10: #{tpu_custom_call.1} parent=5 // pred_check_branch
        %123 = sbr.rel (%p120) target = $region12
      $region11: #{tpu_custom_call.1} parent=5 // pred_region
        %s124 = ssub.s32 %s16, 1
        // Predicated region
        $region13: #{tpu_custom_call.1} parent=11 // pred_check
          %p125 = pneg %p63
        $region14: #{tpu_custom_call.1} parent=11 // pred_check_branch
          %127 = sbr.rel (%p125) target = $region16
        $region15: #{tpu_custom_call.1} parent=11 // pred_region
          %s129 = ssub.s32 2048, 2048
          %130 = vsyncadd [#allocation6], %s129
          %s131 = sshll.u32 [#allocation5], 4
          %s132 = int_to_ptr.vmem [resolvable:$true] %s131
          %137 = dma.hbm_to_vmem [thread:$0]  %s1, 2048, %s132, [#allocation6], 128, 128, 8
        $region16: #{tpu_custom_call.1} parent=11 // pred_fallthru
          _
        // Predicated region
        $region17: #{tpu_custom_call.1} parent=11 // pred_check
          %p138 = pneg %p84
        $region18: #{tpu_custom_call.1} parent=11 // pred_check_branch
          %140 = sbr.rel (%p138) target = $region20
        $region19: #{tpu_custom_call.1} parent=11 // pred_region
          %s142 = ssub.s32 1024, 1024
          %143 = vsyncadd [#allocation6], %s142
          %s144 = sshll.u32 [#allocation7], 4
          %s145 = int_to_ptr.vmem [resolvable:$true] %s144
          %150 = dma.hbm_to_vmem [thread:$0]  %s2, 1024, %s145, [#allocation6], 64, 64, 4
        $region20: #{tpu_custom_call.1} parent=11 // pred_fallthru
          _
      $region12: #{tpu_custom_call.1} parent=5 // pred_fallthru
        _
      %p151 = scmp.lt.s32.totalorder %s16, 2
      // Predicated region
      $region21: #{tpu_custom_call.1} parent=5 // pred_check
        %p152 = pneg %p151
      $region22: #{tpu_custom_call.1} parent=5 // pred_check_branch
        %154 = sbr.rel (%p152) target = $region24
      $region23: #{tpu_custom_call.1} parent=5 // pred_region
        // Predicated region
        $region25: #{tpu_custom_call.1} parent=23 // pred_check
          %p155 = pneg %p36
        $region26: #{tpu_custom_call.1} parent=23 // pred_check_branch
          %157 = sbr.rel (%p155) target = $region28
        $region27: #{tpu_custom_call.1} parent=23 // pred_region
          %s158 = sand.u32 %s26, 1
          %s159 = scalar_lea.sflag [#allocation3], %s158
          %s160 = sand.u32 %s26, 1
          %s161 = smul.addr %s160, 64
          %s162 = scalar_lea.vmem [#allocation2], %s161
          %s163 = smul.u32 16, %s16
          %s165 = ssub.s32 1024, 1024
          %166 = vsyncadd %s159, %s165
          %s167 = smul.addr %s163, 64
          %s168 = scalar_lea.hbm %s0, %s167
          %s169 = sshll.u32 %s162, 4
          %s170 = int_to_ptr.vmem [resolvable:$true] %s169
          %175 = dma.hbm_to_vmem [thread:$0]  %s168, 1024, %s170, %s159, 64, 64, 4
        $region28: #{tpu_custom_call.1} parent=23 // pred_fallthru
          _
      $region24: #{tpu_custom_call.1} parent=5 // pred_fallthru
        _
      %p176 = scmp.le.s32.totalorder 1, %s16
      %p177 = scmp.lt.s32.totalorder %s16, 3
      %p178 = pnand %p176, %p177
      %p179 = pneg %p178
      // Predicated region
      $region29: #{tpu_custom_call.1} parent=5 // pred_check
        _
      $region30: #{tpu_custom_call.1} parent=5 // pred_check_branch
        %181 = sbr.rel (%p178) target = $region32
      $region31: #{tpu_custom_call.1} parent=5 // pred_region
        %s182 = ssub.s32 %s16, 1
        %s183 = sand.u32 %s29, 1
        %s184 = scalar_lea.sflag [#allocation3], %s183
        %s185 = sand.u32 %s29, 1
        %s186 = smul.addr %s185, 64
        %s187 = scalar_lea.vmem [#allocation2], %s186
        // Predicated region
        $region33: #{tpu_custom_call.1} parent=31 // pred_check
          %p188 = pneg %p42
        $region34: #{tpu_custom_call.1} parent=31 // pred_check_branch
          %190 = sbr.rel (%p188) target = $region36
        $region35: #{tpu_custom_call.1} parent=31 // pred_region
          %191 = dma.done %s184, 1024
        $region36: #{tpu_custom_call.1} parent=31 // pred_fallthru
          _
        // Predicated region
        $region37: #{tpu_custom_call.1} parent=31 // pred_check
          %p192 = pneg %p63
        $region38: #{tpu_custom_call.1} parent=31 // pred_check_branch
          %194 = sbr.rel (%p192) target = $region40
        $region39: #{tpu_custom_call.1} parent=31 // pred_region
          %195 = dma.done [#allocation6], 2048
        $region40: #{tpu_custom_call.1} parent=31 // pred_fallthru
          _
        // Predicated region
        $region41: #{tpu_custom_call.1} parent=31 // pred_check
          %p196 = pneg %p84
        $region42: #{tpu_custom_call.1} parent=31 // pred_check_branch
          %198 = sbr.rel (%p196) target = $region44
        $region43: #{tpu_custom_call.1} parent=31 // pred_region
          %199 = dma.done [#allocation6], 1024
        $region44: #{tpu_custom_call.1} parent=31 // pred_fallthru
          _
        %s200 = sand.u32 %s29, 1
        %s201 = scalar_lea.sflag [#allocation3], %s200
        %s202 = sand.u32 %s29, 1
        %s203 = smul.addr %s202, 64
        %s204 = scalar_lea.vmem [#allocation2], %s203
        %p205 = pneg %p42
        %p206 = pneg %p39
        %p207 = pneg %p63
        %p208 = pneg %p60
        %p209 = pneg %p84
        %p210 = pneg %p81
        %p211 = pneg %p110
        %p212 = pneg %p107
        %s213 = sand.u32 %s97, 1
        %s214 = scalar_lea.sflag [#allocation4], %s213
        %s215 = sand.u32 %s97, 1
        %s216 = smul.addr %s215, 128
        %s217 = scalar_lea.vmem [#allocation8], %s216
        %s218 = smul.u32 16, %s21
        %s219 = smul.u32 16, %s21
        %v221 = vld [vmem:[%s187] sm:$0xf]
        %v222 = vld [vmem:[%s187 + $0x4] sm:$0xf]
        %v223 = vld [vmem:[%s187 + $0x8] sm:$0xf]
        %v224 = vld [vmem:[%s187 + $0xc] sm:$0xf]
        %v225 = vld [vmem:[%s187 + $0x10] sm:$0xf]
        %v226 = vld [vmem:[%s187 + $0x14] sm:$0xf]
        %v227 = vld [vmem:[%s187 + $0x18] sm:$0xf]
        %v228 = vld [vmem:[%s187 + $0x1c] sm:$0xf]
        %v229 = vld [vmem:[%s187 + $0x20] sm:$0xf]
        %v230 = vld [vmem:[%s187 + $0x24] sm:$0xf]
        %v231 = vld [vmem:[%s187 + $0x28] sm:$0xf]
        %v232 = vld [vmem:[%s187 + $0x2c] sm:$0xf]
        %v233 = vld [vmem:[%s187 + $0x30] sm:$0xf]
        %v234 = vld [vmem:[%s187 + $0x34] sm:$0xf]
        %v235 = vld [vmem:[%s187 + $0x38] sm:$0xf]
        %v236 = vld [vmem:[%s187 + $0x3c] sm:$0xf]
        %v237 = vld [vmem:[#allocation5] sm:$0xff]
        %v238 = vld [vmem:[#allocation5 + $0x8] sm:$0xff]
        %v239 = vld [vmem:[#allocation5 + $0x10] sm:$0xff]
        %v240 = vld [vmem:[#allocation5 + $0x18] sm:$0xff]
        %v241 = vld [vmem:[#allocation5 + $0x20] sm:$0xff]
        %v242 = vld [vmem:[#allocation5 + $0x28] sm:$0xff]
        %v243 = vld [vmem:[#allocation5 + $0x30] sm:$0xff]
        %v244 = vld [vmem:[#allocation5 + $0x38] sm:$0xff]
        %v245 = vld [vmem:[#allocation5 + $0x40] sm:$0xff]
        %v246 = vld [vmem:[#allocation5 + $0x48] sm:$0xff]
        %v247 = vld [vmem:[#allocation5 + $0x50] sm:$0xff]
        %v248 = vld [vmem:[#allocation5 + $0x58] sm:$0xff]
        %v249 = vld [vmem:[#allocation5 + $0x60] sm:$0xff]
        %v250 = vld [vmem:[#allocation5 + $0x68] sm:$0xff]
        %v251 = vld [vmem:[#allocation5 + $0x70] sm:$0xff]
        %v252 = vld [vmem:[#allocation5 + $0x78] sm:$0xff]
        %v269 = vunpack.c.l.b16 %v221
        %v270 = vunpack.c.l.b16 %v222
        %v271 = vunpack.c.l.b16 %v223
        %v272 = vunpack.c.l.b16 %v224
        %v273 = vunpack.c.l.b16 %v225
        %v274 = vunpack.c.l.b16 %v226
        %v275 = vunpack.c.l.b16 %v227
        %v276 = vunpack.c.l.b16 %v228
        %v277 = vunpack.c.l.b16 %v229
        %v278 = vunpack.c.l.b16 %v230
        %v279 = vunpack.c.l.b16 %v231
        %v280 = vunpack.c.l.b16 %v232
        %v281 = vunpack.c.l.b16 %v233
        %v282 = vunpack.c.l.b16 %v234
        %v283 = vunpack.c.l.b16 %v235
        %v284 = vunpack.c.l.b16 %v236
        %v285 = vpack.c.b16 %v270, %v269
        %v286 = vpack.c.b16 %v272, %v271
        %v287 = vpack.c.b16 %v274, %v273
        %v288 = vpack.c.b16 %v276, %v275
        %v289 = vpack.c.b16 %v278, %v277
        %v290 = vpack.c.b16 %v280, %v279
        %v291 = vpack.c.b16 %v282, %v281
        %v292 = vpack.c.b16 %v284, %v283
        %v317 = vunpack.c.l.b16 %v237
        %v318 = vunpack.c.h.b16 %v237
        %v319 = vunpack.c.l.b16 %v238
        %v320 = vunpack.c.h.b16 %v238
        %v321 = vunpack.c.l.b16 %v239
        %v322 = vunpack.c.h.b16 %v239
        %v323 = vunpack.c.l.b16 %v240
        %v324 = vunpack.c.h.b16 %v240
        %v325 = vunpack.c.l.b16 %v241
        %v326 = vunpack.c.h.b16 %v241
        %v327 = vunpack.c.l.b16 %v242
        %v328 = vunpack.c.h.b16 %v242
        %v329 = vunpack.c.l.b16 %v243
        %v330 = vunpack.c.h.b16 %v243
        %v331 = vunpack.c.l.b16 %v244
        %v332 = vunpack.c.h.b16 %v244
        %v333 = vunpack.c.l.b16 %v245
        %v334 = vunpack.c.h.b16 %v245
        %v335 = vunpack.c.l.b16 %v246
        %v336 = vunpack.c.h.b16 %v246
        %v337 = vunpack.c.l.b16 %v247
        %v338 = vunpack.c.h.b16 %v247
        %v339 = vunpack.c.l.b16 %v248
        %v340 = vunpack.c.h.b16 %v248
        %v341 = vunpack.c.l.b16 %v249
        %v342 = vunpack.c.h.b16 %v249
        %v343 = vunpack.c.l.b16 %v250
        %v344 = vunpack.c.h.b16 %v250
        %v345 = vunpack.c.l.b16 %v251
        %v346 = vunpack.c.h.b16 %v251
        %v347 = vunpack.c.l.b16 %v252
        %v348 = vunpack.c.h.b16 %v252
        %v349 = vpack.c.b16 %v319, %v317
        %v350 = vpack.c.b16 %v320, %v318
        %v351 = vpack.c.b16 %v323, %v321
        %v352 = vpack.c.b16 %v324, %v322
        %v353 = vpack.c.b16 %v327, %v325
        %v354 = vpack.c.b16 %v328, %v326
        %v355 = vpack.c.b16 %v331, %v329
        %v356 = vpack.c.b16 %v332, %v330
        %v357 = vpack.c.b16 %v335, %v333
        %v358 = vpack.c.b16 %v336, %v334
        %v359 = vpack.c.b16 %v339, %v337
        %v360 = vpack.c.b16 %v340, %v338
        %v361 = vpack.c.b16 %v343, %v341
        %v362 = vpack.c.b16 %v344, %v342
        %v363 = vpack.c.b16 %v347, %v345
        %v364 = vpack.c.b16 %v348, %v346
        %381 = vmatprep.subr.bf16.mxu0 %v350
        %382 = vmatpush1.bf16.msra.mxu0 %v349
        %383 = vmatprep.subr.bf16.mxu0 %v352
        %384 = vmatpush1.bf16.msra.mxu0 %v351
        %385 = vmatprep.subr.bf16.mxu0 %v354
        %386 = vmatpush1.bf16.msra.mxu0 %v353
        %387 = vmatprep.subr.bf16.mxu0 %v356
        %388 = vmatpush1.bf16.msra.mxu0 %v355
        %389 = vmatprep.subr.bf16.mxu0 %v358
        %390 = vmatpush1.bf16.msra.mxu0 %v357
        %391 = vmatprep.subr.bf16.mxu0 %v360
        %392 = vmatpush1.bf16.msra.mxu0 %v359
        %393 = vmatprep.subr.bf16.mxu0 %v362
        %394 = vmatpush1.bf16.msra.mxu0 %v361
        %395 = vmatprep.subr.bf16.mxu0 %v364
        %396 = vmatpush1.bf16.msra.mxu0 %v363
        %397 = vmatprep.subr.bf16.mxu0 0
        %398 = vmatpush1.bf16.msra.mxu0 0
        %399 = vmatprep.subr.bf16.mxu0 0
        %400 = vmatpush1.bf16.msra.mxu0 0
        %401 = vmatprep.subr.bf16.mxu0 0
        %402 = vmatpush1.bf16.msra.mxu0 0
        %403 = vmatprep.subr.bf16.mxu0 0
        %404 = vmatpush1.bf16.msra.mxu0 0
        %405 = vmatprep.subr.bf16.mxu0 0
        %406 = vmatpush1.bf16.msra.mxu0 0
        %407 = vmatprep.subr.bf16.mxu0 0
        %408 = vmatpush1.bf16.msra.mxu0 0
        %409 = vmatprep.subr.bf16.mxu0 0
        %410 = vmatpush1.bf16.msra.mxu0 0
        %411 = vmatprep.subr.bf16.mxu0 0
        %412 = vmatpush1.bf16.msra.mxu0 0
        %413 = vmatprep.mubr.bf16.mxu0 0
        %414 = vmatmul.mubr.bf16.gmra.mrb[0].mxu0 %v285
        %v415 = vpop.f32.mrb[0].mxu0
        %v416 = vadd.f32 0.0, %v415
        %v417 = vpop.f32.mrb[0].mxu0
        %v418 = vadd.f32 0.0, %v417
        %v419 = vpop.f32.mrb[0].mxu0
        %v420 = vadd.f32 0.0, %v419
        %v421 = vpop.f32.mrb[0].mxu0
        %v422 = vadd.f32 0.0, %v421
        %423 = vmatprep.mubr.bf16.mxu0 0
        %424 = vmatmul.mubr.bf16.gmra.mrb[0].mxu0 %v286
        %v425 = vpop.f32.mrb[0].mxu0
        %v426 = vadd.f32 0.0, %v425
        %v427 = vpop.f32.mrb[0].mxu0
        %v428 = vadd.f32 0.0, %v427
        %v429 = vpop.f32.mrb[0].mxu0
        %v430 = vadd.f32 0.0, %v429
        %v431 = vpop.f32.mrb[0].mxu0
        %v432 = vadd.f32 0.0, %v431
        %433 = vmatprep.mubr.bf16.mxu0 0
        %434 = vmatmul.mubr.bf16.gmra.mrb[0].mxu0 %v287
        %v435 = vpop.f32.mrb[0].mxu0
        %v436 = vadd.f32 0.0, %v435
        %v437 = vpop.f32.mrb[0].mxu0
        %v438 = vadd.f32 0.0, %v437
        %v439 = vpop.f32.mrb[0].mxu0
        %v440 = vadd.f32 0.0, %v439
        %v441 = vpop.f32.mrb[0].mxu0
        %v442 = vadd.f32 0.0, %v441
        %443 = vmatprep.mubr.bf16.mxu0 0
        %444 = vmatmul.mubr.bf16.gmra.mrb[0].mxu0 %v288
        %v445 = vpop.f32.mrb[0].mxu0
        %v446 = vadd.f32 0.0, %v445
        %v447 = vpop.f32.mrb[0].mxu0
        %v448 = vadd.f32 0.0, %v447
        %v449 = vpop.f32.mrb[0].mxu0
        %v450 = vadd.f32 0.0, %v449
        %v451 = vpop.f32.mrb[0].mxu0
        %v452 = vadd.f32 0.0, %v451
        %453 = vmatprep.mubr.bf16.mxu0 0
        %454 = vmatmul.mubr.bf16.gmra.mrb[0].mxu0 %v289
        %v455 = vpop.f32.mrb[0].mxu0
        %v456 = vadd.f32 0.0, %v455
        %v457 = vpop.f32.mrb[0].mxu0
        %v458 = vadd.f32 0.0, %v457
        %v459 = vpop.f32.mrb[0].mxu0
        %v460 = vadd.f32 0.0, %v459
        %v461 = vpop.f32.mrb[0].mxu0
        %v462 = vadd.f32 0.0, %v461
        %463 = vmatprep.mubr.bf16.mxu0 0
        %464 = vmatmul.mubr.bf16.gmra.mrb[0].mxu0 %v290
        %v465 = vpop.f32.mrb[0].mxu0
        %v466 = vadd.f32 0.0, %v465
        %v467 = vpop.f32.mrb[0].mxu0
        %v468 = vadd.f32 0.0, %v467
        %v469 = vpop.f32.mrb[0].mxu0
        %v470 = vadd.f32 0.0, %v469
        %v471 = vpop.f32.mrb[0].mxu0
        %v472 = vadd.f32 0.0, %v471
        %473 = vmatprep.mubr.bf16.mxu0 0
        %474 = vmatmul.mubr.bf16.gmra.mrb[0].mxu0 %v291
        %v475 = vpop.f32.mrb[0].mxu0
        %v476 = vadd.f32 0.0, %v475
        %v477 = vpop.f32.mrb[0].mxu0
        %v478 = vadd.f32 0.0, %v477
        %v479 = vpop.f32.mrb[0].mxu0
        %v480 = vadd.f32 0.0, %v479
        %v481 = vpop.f32.mrb[0].mxu0
        %v482 = vadd.f32 0.0, %v481
        %483 = vmatprep.mubr.bf16.mxu0 0
        %484 = vmatmul.mubr.bf16.gmra.mrb[0].mxu0 %v292
        %v485 = vpop.f32.mrb[0].mxu0
        %v486 = vadd.f32 0.0, %v485
        %v487 = vpop.f32.mrb[0].mxu0
        %v488 = vadd.f32 0.0, %v487
        %v489 = vpop.f32.mrb[0].mxu0
        %v490 = vadd.f32 0.0, %v489
        %v491 = vpop.f32.mrb[0].mxu0
        %v492 = vadd.f32 0.0, %v491
        %493 = vdwg.mxu0
        %v494 = vmul.f32 %v416, %v416
        %v495 = vmul.f32 %v420, %v420
        %v496 = vmul.f32 %v426, %v426
        %v497 = vmul.f32 %v430, %v430
        %v498 = vmul.f32 %v436, %v436
        %v499 = vmul.f32 %v440, %v440
        %v500 = vmul.f32 %v446, %v446
        %v501 = vmul.f32 %v450, %v450
        %v502 = vmul.f32 %v456, %v456
        %v503 = vmul.f32 %v460, %v460
        %v504 = vmul.f32 %v466, %v466
        %v505 = vmul.f32 %v470, %v470
        %v506 = vmul.f32 %v476, %v476
        %v507 = vmul.f32 %v480, %v480
        %v508 = vmul.f32 %v486, %v486
        %v509 = vmul.f32 %v490, %v490
        %v510 = vmul.f32 %v418, %v418
        %v511 = vmul.f32 %v422, %v422
        %v512 = vmul.f32 %v428, %v428
        %v513 = vmul.f32 %v432, %v432
        %v514 = vmul.f32 %v438, %v438
        %v515 = vmul.f32 %v442, %v442
        %v516 = vmul.f32 %v448, %v448
        %v517 = vmul.f32 %v452, %v452
        %v518 = vmul.f32 %v458, %v458
        %v519 = vmul.f32 %v462, %v462
        %v520 = vmul.f32 %v468, %v468
        %v521 = vmul.f32 %v472, %v472
        %v522 = vmul.f32 %v478, %v478
        %v523 = vmul.f32 %v482, %v482
        %v524 = vmul.f32 %v488, %v488
        %v525 = vmul.f32 %v492, %v492
        %v526 = vadd.f32 %v494, %v510
        %v527 = vadd.f32 %v495, %v511
        %v528 = vadd.f32 %v496, %v512
        %v529 = vadd.f32 %v497, %v513
        %v530 = vadd.f32 %v498, %v514
        %v531 = vadd.f32 %v499, %v515
        %v532 = vadd.f32 %v500, %v516
        %v533 = vadd.f32 %v501, %v517
        %v534 = vadd.f32 %v502, %v518
        %v535 = vadd.f32 %v503, %v519
        %v536 = vadd.f32 %v504, %v520
        %v537 = vadd.f32 %v505, %v521
        %v538 = vadd.f32 %v506, %v522
        %v539 = vadd.f32 %v507, %v523
        %v540 = vadd.f32 %v508, %v524
        %v541 = vadd.f32 %v509, %v525
        %v542 = vpack.c.bf16 %v527, %v526
        %v543 = vpack.c.bf16 %v529, %v528
        %v544 = vpack.c.bf16 %v531, %v530
        %v545 = vpack.c.bf16 %v533, %v532
        %v546 = vpack.c.bf16 %v535, %v534
        %v547 = vpack.c.bf16 %v537, %v536
        %v548 = vpack.c.bf16 %v539, %v538
        %v549 = vpack.c.bf16 %v541, %v540
        %v550 = vld [vmem:[#allocation7] sm:$0xf]
        %v551 = vld [vmem:[#allocation7 + $0x4] sm:$0xf]
        %v552 = vld [vmem:[#allocation7 + $0x8] sm:$0xf]
        %v553 = vld [vmem:[#allocation7 + $0xc] sm:$0xf]
        %v554 = vld [vmem:[#allocation7 + $0x10] sm:$0xf]
        %v555 = vld [vmem:[#allocation7 + $0x14] sm:$0xf]
        %v556 = vld [vmem:[#allocation7 + $0x18] sm:$0xf]
        %v557 = vld [vmem:[#allocation7 + $0x1c] sm:$0xf]
        %v558 = vld [vmem:[#allocation7 + $0x20] sm:$0xf]
        %v559 = vld [vmem:[#allocation7 + $0x24] sm:$0xf]
        %v560 = vld [vmem:[#allocation7 + $0x28] sm:$0xf]
        %v561 = vld [vmem:[#allocation7 + $0x2c] sm:$0xf]
        %v562 = vld [vmem:[#allocation7 + $0x30] sm:$0xf]
        %v563 = vld [vmem:[#allocation7 + $0x34] sm:$0xf]
        %v564 = vld [vmem:[#allocation7 + $0x38] sm:$0xf]
        %v565 = vld [vmem:[#allocation7 + $0x3c] sm:$0xf]
        %v582 = vunpack.c.l.b16 %v550
        %v583 = vunpack.c.l.b16 %v551
        %v584 = vunpack.c.l.b16 %v552
        %v585 = vunpack.c.l.b16 %v553
        %v586 = vunpack.c.l.b16 %v554
        %v587 = vunpack.c.l.b16 %v555
        %v588 = vunpack.c.l.b16 %v556
        %v589 = vunpack.c.l.b16 %v557
        %v590 = vunpack.c.l.b16 %v558
        %v591 = vunpack.c.l.b16 %v559
        %v592 = vunpack.c.l.b16 %v560
        %v593 = vunpack.c.l.b16 %v561
        %v594 = vunpack.c.l.b16 %v562
        %v595 = vunpack.c.l.b16 %v563
        %v596 = vunpack.c.l.b16 %v564
        %v597 = vunpack.c.l.b16 %v565
        %v598 = vpack.c.b16 %v583, %v582
        %v599 = vpack.c.b16 %v585, %v584
        %v600 = vpack.c.b16 %v587, %v586
        %v601 = vpack.c.b16 %v589, %v588
        %v602 = vpack.c.b16 %v591, %v590
        %v603 = vpack.c.b16 %v593, %v592
        %v604 = vpack.c.b16 %v595, %v594
        %v605 = vpack.c.b16 %v597, %v596
        %614 = vmatprep.subr.bf16.mxu0 0
        %615 = vmatpush1.bf16.msra.mxu0 %v598
        %616 = vmatprep.subr.bf16.mxu0 0
        %617 = vmatpush1.bf16.msra.mxu0 %v599
        %618 = vmatprep.subr.bf16.mxu0 0
        %619 = vmatpush1.bf16.msra.mxu0 %v600
        %620 = vmatprep.subr.bf16.mxu0 0
        %621 = vmatpush1.bf16.msra.mxu0 %v601
        %622 = vmatprep.subr.bf16.mxu0 0
        %623 = vmatpush1.bf16.msra.mxu0 %v602
        %624 = vmatprep.subr.bf16.mxu0 0
        %625 = vmatpush1.bf16.msra.mxu0 %v603
        %626 = vmatprep.subr.bf16.mxu0 0
        %627 = vmatpush1.bf16.msra.mxu0 %v604
        %628 = vmatprep.subr.bf16.mxu0 0
        %629 = vmatpush1.bf16.msra.mxu0 %v605
        %630 = vmatprep.subr.bf16.mxu0 0
        %631 = vmatpush1.bf16.msra.mxu0 0
        %632 = vmatprep.subr.bf16.mxu0 0
        %633 = vmatpush1.bf16.msra.mxu0 0
        %634 = vmatprep.subr.bf16.mxu0 0
        %635 = vmatpush1.bf16.msra.mxu0 0
        %636 = vmatprep.subr.bf16.mxu0 0
        %637 = vmatpush1.bf16.msra.mxu0 0
        %638 = vmatprep.subr.bf16.mxu0 0
        %639 = vmatpush1.bf16.msra.mxu0 0
        %640 = vmatprep.subr.bf16.mxu0 0
        %641 = vmatpush1.bf16.msra.mxu0 0
        %642 = vmatprep.subr.bf16.mxu0 0
        %643 = vmatpush1.bf16.msra.mxu0 0
        %644 = vmatprep.subr.bf16.mxu0 0
        %645 = vmatpush1.bf16.msra.mxu0 0
        %646 = vmatprep.mubr.bf16.mxu0 0
        %647 = vmatmul.mubr.bf16.gmra.mrb[0].mxu0 %v542
        %v648 = vpop.f32.mrb[0].mxu0
        %v649 = vadd.f32 1e-05, %v648
        %v650 = vpop.f32.mrb[0].mxu0
        %v651 = vpop.f32.mrb[0].mxu0
        %v652 = vadd.f32 1e-05, %v651
        %v653 = vpop.f32.mrb[0].mxu0
        %654 = vmatprep.mubr.bf16.mxu0 0
        %655 = vmatmul.mubr.bf16.gmra.mrb[0].mxu0 %v543
        %v656 = vpop.f32.mrb[0].mxu0
        %v657 = vadd.f32 1e-05, %v656
        %v658 = vpop.f32.mrb[0].mxu0
        %v659 = vpop.f32.mrb[0].mxu0
        %v660 = vadd.f32 1e-05, %v659
        %v661 = vpop.f32.mrb[0].mxu0
        %662 = vmatprep.mubr.bf16.mxu0 0
        %663 = vmatmul.mubr.bf16.gmra.mrb[0].mxu0 %v544
        %v664 = vpop.f32.mrb[0].mxu0
        %v665 = vadd.f32 1e-05, %v664
        %v666 = vpop.f32.mrb[0].mxu0
        %v667 = vpop.f32.mrb[0].mxu0
        %v668 = vadd.f32 1e-05, %v667
        %v669 = vpop.f32.mrb[0].mxu0
        %670 = vmatprep.mubr.bf16.mxu0 0
        %671 = vmatmul.mubr.bf16.gmra.mrb[0].mxu0 %v545
        %v672 = vpop.f32.mrb[0].mxu0
        %v673 = vadd.f32 1e-05, %v672
        %v674 = vpop.f32.mrb[0].mxu0
        %v675 = vpop.f32.mrb[0].mxu0
        %v676 = vadd.f32 1e-05, %v675
        %v677 = vpop.f32.mrb[0].mxu0
        %678 = vmatprep.mubr.bf16.mxu0 0
        %679 = vmatmul.mubr.bf16.gmra.mrb[0].mxu0 %v546
        %v680 = vpop.f32.mrb[0].mxu0
        %v681 = vadd.f32 1e-05, %v680
        %v682 = vpop.f32.mrb[0].mxu0
        %v683 = vpop.f32.mrb[0].mxu0
        %v684 = vadd.f32 1e-05, %v683
        %v685 = vpop.f32.mrb[0].mxu0
        %686 = vmatprep.mubr.bf16.mxu0 0
        %687 = vmatmul.mubr.bf16.gmra.mrb[0].mxu0 %v547
        %v688 = vpop.f32.mrb[0].mxu0
        %v689 = vadd.f32 1e-05, %v688
        %v690 = vpop.f32.mrb[0].mxu0
        %v691 = vpop.f32.mrb[0].mxu0
        %v692 = vadd.f32 1e-05, %v691
        %v693 = vpop.f32.mrb[0].mxu0
        %694 = vmatprep.mubr.bf16.mxu0 0
        %695 = vmatmul.mubr.bf16.gmra.mrb[0].mxu0 %v548
        %v696 = vpop.f32.mrb[0].mxu0
        %v697 = vadd.f32 1e-05, %v696
        %v698 = vpop.f32.mrb[0].mxu0
        %v699 = vpop.f32.mrb[0].mxu0
        %v700 = vadd.f32 1e-05, %v699
        %v701 = vpop.f32.mrb[0].mxu0
        %702 = vmatprep.mubr.bf16.mxu0 0
        %703 = vmatmul.mubr.bf16.gmra.mrb[0].mxu0 %v549
        %v704 = vpop.f32.mrb[0].mxu0
        %v705 = vadd.f32 1e-05, %v704
        %v706 = vpop.f32.mrb[0].mxu0
        %v707 = vpop.f32.mrb[0].mxu0
        %v708 = vadd.f32 1e-05, %v707
        %v709 = vpop.f32.mrb[0].mxu0
        %710 = vdwg.mxu0
        %v711 = vlog2.pop %v649
        %v712 = vmul.f32 %v711, 0.6931472
        %v713 = vlog2.pop %v652
        %v714 = vmul.f32 %v713, 0.6931472
        %v715 = vlog2.pop %v657
        %v716 = vmul.f32 %v715, 0.6931472
        %v717 = vlog2.pop %v660
        %v718 = vmul.f32 %v717, 0.6931472
        %v719 = vlog2.pop %v665
        %v720 = vmul.f32 %v719, 0.6931472
        %v721 = vlog2.pop %v668
        %v722 = vmul.f32 %v721, 0.6931472
        %v723 = vlog2.pop %v673
        %v724 = vmul.f32 %v723, 0.6931472
        %v725 = vlog2.pop %v676
        %v726 = vmul.f32 %v725, 0.6931472
        %v727 = vlog2.pop %v681
        %v728 = vmul.f32 %v727, 0.6931472
        %v729 = vlog2.pop %v684
        %v730 = vmul.f32 %v729, 0.6931472
        %v731 = vlog2.pop %v689
        %v732 = vmul.f32 %v731, 0.6931472
        %v733 = vlog2.pop %v692
        %v734 = vmul.f32 %v733, 0.6931472
        %v735 = vlog2.pop %v697
        %v736 = vmul.f32 %v735, 0.6931472
        %v737 = vlog2.pop %v700
        %v738 = vmul.f32 %v737, 0.6931472
        %v739 = vlog2.pop %v705
        %v740 = vmul.f32 %v739, 0.6931472
        %v741 = vlog2.pop %v708
        %v742 = vmul.f32 %v741, 0.6931472
        %v743 = vmul.f32 %v712, 0.2
        %v744 = vmul.f32 %v714, 0.2
        %v745 = vmul.f32 %v716, 0.2
        %v746 = vmul.f32 %v718, 0.2
        %v747 = vmul.f32 %v720, 0.2
        %v748 = vmul.f32 %v722, 0.2
        %v749 = vmul.f32 %v724, 0.2
        %v750 = vmul.f32 %v726, 0.2
        %v751 = vmul.f32 %v728, 0.2
        %v752 = vmul.f32 %v730, 0.2
        %v753 = vmul.f32 %v732, 0.2
        %v754 = vmul.f32 %v734, 0.2
        %v755 = vmul.f32 %v736, 0.2
        %v756 = vmul.f32 %v738, 0.2
        %v757 = vmul.f32 %v740, 0.2
        %v758 = vmul.f32 %v742, 0.2
        %v759 = vadd.f32 %v743, 0.9
        %v760 = vadd.f32 %v744, 0.9
        %v761 = vadd.f32 %v745, 0.9
        %v762 = vadd.f32 %v746, 0.9
        %v763 = vadd.f32 %v747, 0.9
        %v764 = vadd.f32 %v748, 0.9
        %v765 = vadd.f32 %v749, 0.9
        %v766 = vadd.f32 %v750, 0.9
        %v767 = vadd.f32 %v751, 0.9
        %v768 = vadd.f32 %v752, 0.9
        %v769 = vadd.f32 %v753, 0.9
        %v770 = vadd.f32 %v754, 0.9
        %v771 = vadd.f32 %v755, 0.9
        %v772 = vadd.f32 %v756, 0.9
        %v773 = vadd.f32 %v757, 0.9
        %v774 = vadd.f32 %v758, 0.9
        %775 = vst [vmem:[%s217] sm:$0xff] %v759
        %776 = vst [vmem:[%s217 + $0x8] sm:$0xff] %v760
        %777 = vst [vmem:[%s217 + $0x10] sm:$0xff] %v761
        %778 = vst [vmem:[%s217 + $0x18] sm:$0xff] %v762
        %779 = vst [vmem:[%s217 + $0x20] sm:$0xff] %v763
        %780 = vst [vmem:[%s217 + $0x28] sm:$0xff] %v764
        %781 = vst [vmem:[%s217 + $0x30] sm:$0xff] %v765
        %782 = vst [vmem:[%s217 + $0x38] sm:$0xff] %v766
        %783 = vst [vmem:[%s217 + $0x40] sm:$0xff] %v767
        %784 = vst [vmem:[%s217 + $0x48] sm:$0xff] %v768
        %785 = vst [vmem:[%s217 + $0x50] sm:$0xff] %v769
        %786 = vst [vmem:[%s217 + $0x58] sm:$0xff] %v770
        %787 = vst [vmem:[%s217 + $0x60] sm:$0xff] %v771
        %788 = vst [vmem:[%s217 + $0x68] sm:$0xff] %v772
        %789 = vst [vmem:[%s217 + $0x70] sm:$0xff] %v773
        %790 = vst [vmem:[%s217 + $0x78] sm:$0xff] %v774
        %s791 = sand.u32 %s97, 1
        %s792 = scalar_lea.sflag [#allocation4], %s791
        %s793 = sand.u32 %s97, 1
        %s794 = smul.addr %s793, 128
        %s795 = scalar_lea.vmem [#allocation8], %s794
        // Predicated region
        $region45: #{tpu_custom_call.1} parent=31 // pred_check
          %p796 = pneg %p107
        $region46: #{tpu_custom_call.1} parent=31 // pred_check_branch
          %798 = sbr.rel (%p796) target = $region48
        $region47: #{tpu_custom_call.1} parent=31 // pred_region
          %s799 = smul.u32 16, %s21
          %s801 = ssub.s32 2048, 2048
          %802 = vsyncadd %s792, %s801
          %s803 = smul.addr %s799, 128
          %s804 = scalar_lea.hbm %s3, %s803
          %s805 = sshll.u32 %s795, 4
          %s806 = int_to_ptr.vmem [resolvable:$true] %s805
          %811 = dma.vmem_to_hbm [thread:$0]  %s806, 2048, %s804, %s792, 128, 128, 8
        $region48: #{tpu_custom_call.1} parent=31 // pred_fallthru
          _
      $region32: #{tpu_custom_call.1} parent=5 // pred_fallthru
        _
      %p812 = scmp.le.s32.totalorder 2, %s16
      // Predicated region
      $region49: #{tpu_custom_call.1} parent=5 // pred_check
        %p813 = pneg %p812
      $region50: #{tpu_custom_call.1} parent=5 // pred_check_branch
        %815 = sbr.rel (%p813) target = $region52
      $region51: #{tpu_custom_call.1} parent=5 // pred_region
        %s816 = ssub.s32 %s16, 2
        // Predicated region
        $region53: #{tpu_custom_call.1} parent=51 // pred_check
          %p817 = pneg %p113
        $region54: #{tpu_custom_call.1} parent=51 // pred_check_branch
          %819 = sbr.rel (%p817) target = $region56
        $region55: #{tpu_custom_call.1} parent=51 // pred_region
          %s820 = sand.u32 %s98, 1
          %s821 = scalar_lea.sflag [#allocation4], %s820
          %s822 = sand.u32 %s98, 1
          %s823 = smul.addr %s822, 128
          %s824 = scalar_lea.vmem [#allocation8], %s823
          %825 = dma.done %s821, 2048
        $region56: #{tpu_custom_call.1} parent=51 // pred_fallthru
          _
      $region52: #{tpu_custom_call.1} parent=5 // pred_fallthru
        _
    $region6: #{tpu_custom_call.1} parent=1 // loop_footer
      %s20 = sadd.s32 1, %s16
    $region7: #{tpu_custom_call.1} parent=1 // loop_footer_branch
      %15 = sbr.rel target = $region3
    $region8: #{tpu_custom_call.1} parent=1 // loop_exit
      _
    %826 = vsyncpa [#allocation3], 1
    %s827 = scalar_lea.sflag [#allocation3], 1
    %828 = vsyncpa %s827, 1
    %829 = vsyncpa [#allocation6], 1
    %830 = vsyncpa [#allocation4], 1
    %s831 = scalar_lea.sflag [#allocation4], 1
    %832 = vsyncpa %s831, 1

</llo_original>
